<compile_context>
chip_gen: v7x
topology: tpu7x:2x2x1
jax: 0.10.0
libtpu: 0.0.40
codegen_flags: <defaults>
</compile_context>

<pallas_src>
import functools

import jax
import jax.numpy as jnp
from jax.experimental import pallas as pl
from jax.experimental.pallas import tpu as pltpu


def _vmem_capacity_bytes():
    """Physical VMEM per TensorCore; falls back to the smallest (v7x, 64 MiB)."""
    try:
        cap = int(getattr(pltpu.get_tpu_info(), "vmem_capacity_bytes"))
        if cap > 0:
            return cap
    except Exception:
        pass
    return 64 * 1024 * 1024


def _choose_tile(M, D, in_itemsize, masked):
    """Pick the row-tile size tm and return (tm, vmem_capacity_bytes)."""
    cap = _vmem_capacity_bytes()
    # Budget for the per-step footprint (leave >half of VMEM for the output
    # block, compiler temporaries, and pipeline slack).
    tile_budget = int(cap * 0.45)
    # Per-row VMEM footprint of one grid step:
    #   2 inputs x 2 pipeline buffers, native dtype           -> 4*D*itemsize
    #   f32 elementwise temporaries (upcasts / diff / square) -> ~3*D*4
    #   mask (tm, 1) x 2 buffers, f32                         -> 8 (negligible)
    per_row = 4 * D * max(1, in_itemsize) + 3 * D * 4 + (8 if masked else 0)
    tm_budget = max(1, tile_budget // per_row)
    # Aim for ~8 MiB per input block per step so the ~0.35 us fixed per-step
    # overhead stays a few percent of the HBM time on every generation.
    tm_target = max(1, (8 * 1024 * 1024) // max(1, D * in_itemsize))
    tm = min(tm_budget, tm_target)
    tm = max(32, (tm // 32) * 32)           # multiple of 32: sublane-packing safe
    m_ceil = ((M + 31) // 32) * 32
    return min(tm, m_ceil), cap


def _mae_loss_kernel(*refs, tm, spc, nblk, n_rows, masked):
    """Accumulates grouped partial sums of [mask *] (p - t)^2 into out_ref."""
    if masked:
        p_ref, t_ref, m_ref, out_ref = refs
    else:
        p_ref, t_ref, out_ref = refs
    c = pl.program_id(0)          # parallel chunk
    s = pl.program_id(1)          # reduction step within the chunk
    D = p_ref.shape[-1]

    @pl.when(s == 0)
    def _():
        out_ref[...] = jnp.zeros_like(out_ref)

    p = p_ref[...].astype(jnp.float32)
    t = t_ref[...].astype(jnp.float32)
    d = p - t
    d = d * d                                  # (tm, D) squared error
    if masked:
        d = d * m_ref[...].astype(jnp.float32)  # (tm, 1) lane-broadcast mask

    blk = c * spc + s                           # global block index (may pad)

    # Steady state: every row of this block is in range -> plain accumulate.
    @pl.when(blk < nblk - 1)
    def _():
        out_ref[...] += d.reshape(tm // 8, 8, D).sum(axis=0)

    # Last valid block and over-range (padded/clamped) steps: zero rows that
    # lie past n_rows.  jnp.where selects the 0.0 literal, so garbage (even
    # NaN/Inf bit patterns) in padded regions never propagates.
    @pl.when(blk >= nblk - 1)
    def _():
        rows = blk * tm + jax.lax.broadcasted_iota(jnp.int32, (tm, 1), 0)
        contrib = jnp.where(rows < n_rows, d, 0.0)
        out_ref[...] += contrib.reshape(tm // 8, 8, D).sum(axis=0)


@functools.partial(jax.jit,
                   static_argnames=("tm", "num_chunks", "spc", "vmem_limit",
                                    "masked"))
def _mae_partial_sums(preds2d, targets2d, mask2d, *, tm, num_chunks, spc,
                      vmem_limit, masked):
    M, D = preds2d.shape
    nblk = pl.cdiv(M, tm)

    def in_map(c, s):
        # Clamp so padding steps (c*spc + s >= nblk) re-read the last valid
        # block; their rows fail the in-kernel `rows < n_rows` check and
        # contribute exactly 0.
        return (jnp.minimum(c * spc + s, nblk - 1), 0)

    kernel = functools.partial(_mae_loss_kernel, tm=tm, spc=spc, nblk=nblk,
                               n_rows=M, masked=masked)
    in_specs = [pl.BlockSpec((tm, D), in_map),   # preds  (native dtype)
                pl.BlockSpec((tm, D), in_map)]   # targets(native dtype)
    operands = (preds2d, targets2d)
    if masked:
        in_specs.append(pl.BlockSpec((tm, 1), in_map))   # mask (f32, 1/row)
        operands = operands + (mask2d,)

    return pl.pallas_call(
        kernel,
        out_shape=jax.ShapeDtypeStruct((num_chunks * 8, D), jnp.float32),
        grid_spec=pltpu.PrefetchScalarGridSpec(
            num_scalar_prefetch=0,
            grid=(num_chunks, spc),
            in_specs=in_specs,
            # One lane-dense (8, D) accumulator block per chunk, resident in
            # VMEM across the "arbitrary" reduction axis.
            out_specs=pl.BlockSpec((8, D), lambda c, s: (c, 0)),
        ),
        compiler_params=pltpu.CompilerParams(
            dimension_semantics=("parallel", "arbitrary"),
            vmem_limit_bytes=vmem_limit),
    )(*operands)


def mae_loss(preds, targets, mask=None):
    """JAX/Pallas equivalent of MAELoss.forward.

    preds/targets: [B, N, D] (any float dtype); mask: optional [B, N].
    Returns a float32 scalar.
    """
    B, N, D = preds.shape
    M = B * N
    p2 = preds.reshape(M, D)        # native dtype; no f32 copy through HBM
    t2 = targets.reshape(M, D)
    in_itemsize = max(jnp.dtype(preds.dtype).itemsize,
                      jnp.dtype(targets.dtype).itemsize)
    masked = mask is not None
    if masked:
        assert mask.shape == (B, N)
        m2 = mask.reshape(M, 1).astype(jnp.float32)
        # TODO(synk): mask.sum()==0 yields NaN, same as the torch original.
        denom = jnp.float32(D) * mask.astype(jnp.float32).sum()
    else:
        m2 = None
        denom = jnp.float32(M) * jnp.float32(D)

    tm, cap = _choose_tile(M, D, in_itemsize, masked)
    vmem_limit = int(cap * 0.8)                 # explicit, generation-aware

    nblk = pl.cdiv(M, tm)
    if nblk <= 1:
        num_chunks = 1
    else:
        num_chunks = min(8, nblk)
        num_chunks -= num_chunks % 2            # even, >= 2 (2-TC split on v7x)
    spc = pl.cdiv(nblk, num_chunks)             # reduction steps per chunk
    num_chunks = pl.cdiv(nblk, spc)             # trim fully-padded chunks
    if nblk >= 2:
        num_chunks = max(num_chunks, 2)         # both v7x cores get work

    partial = _mae_partial_sums(p2, t2, m2, tm=tm, num_chunks=num_chunks,
                                spc=spc, vmem_limit=vmem_limit, masked=masked)
    return partial.sum() / denom


def _reference(preds, targets, mask=None):
    diff = (preds.astype(jnp.float32) - targets.astype(jnp.float32)) ** 2
    if mask is None:
        return diff.mean(axis=-1).mean()
    m = mask.astype(jnp.float32)[..., None]
    return (diff * m).mean(axis=-1).sum() / m.sum()


if __name__ == "__main__":
    key = jax.random.PRNGKey(0)
    k1, k2, k3 = jax.random.split(key, 3)

    B, N, D = 2, 8, 32
    preds = jax.random.normal(k1, (B, N, D), dtype=jnp.float32)
    targets = jax.random.normal(k2, (B, N, D), dtype=jnp.float32)
    mask = (jax.random.uniform(k3, (B, N)) > 0.5).astype(jnp.float32)

    # masked path
    loss_masked = mae_loss(preds, targets, mask)
    jax.block_until_ready(loss_masked)
    assert jnp.allclose(loss_masked, _reference(preds, targets, mask),
                        rtol=1e-5, atol=1e-6)

    # unmasked (specialized, no-mask-buffer) path
    loss_plain = mae_loss(preds, targets, None)
    jax.block_until_ready(loss_plain)
    assert jnp.allclose(loss_plain, _reference(preds, targets, None),
                        rtol=1e-5, atol=1e-6)

    # ragged-row-count + bf16-native-input path (exercises in-kernel tail mask)
    k4, k5, k6 = jax.random.split(k3, 3)
    B2, N2, D2 = 3, 5, 32
    p_r = jax.random.normal(k4, (B2, N2, D2), dtype=jnp.bfloat16)
    t_r = jax.random.normal(k5, (B2, N2, D2), dtype=jnp.bfloat16)
    m_r = (jax.random.uniform(k6, (B2, N2)) > 0.5).astype(jnp.float32)
    loss_r = mae_loss(p_r, t_r, m_r)
    jax.block_until_ready(loss_r)
    assert jnp.allclose(loss_r, _reference(p_r, t_r, m_r),
                        rtol=1e-3, atol=1e-5)

    print("KERNEL_OK")
</pallas_src>

<mosaic_0001>
module attributes {stable_mosaic.version = 11 : i64} {
  func.func @_mae_loss_kernel(%arg0: i32, %arg1: i32, %arg2: memref<32x32xf32, #tpu.memory_space<vmem>>, %arg3: memref<32x32xf32, #tpu.memory_space<vmem>>, %arg4: memref<32x1xf32, #tpu.memory_space<vmem>>, %arg5: memref<8x32xf32, #tpu.memory_space<vmem>>) attributes {dimension_semantics = [#tpu.dimension_semantics<parallel>, #tpu.dimension_semantics<arbitrary>], iteration_bounds = array<i64: 1, 1>, scalar_prefetch = 0 : i64, scratch_operands = 0 : i64, tpu.core_type = #tpu.core_type<tc>, window_params = [{transform_indices = @transform_0, window_bounds = array<i64: 32, 32>}, {transform_indices = @transform_1, window_bounds = array<i64: 32, 32>}, {transform_indices = @transform_2, window_bounds = array<i64: 32, 1>}, {transform_indices = @transform_3, window_bounds = array<i64: 8, 32>}]} {
    %c0_i32 = arith.constant 0 : i32
    %0 = arith.cmpi eq, %arg1, %c0_i32 : i32
    %1 = arith.extui %0 : i1 to i32
    %c0_i32_0 = arith.constant 0 : i32
    %2 = arith.cmpi ne, %1, %c0_i32_0 : i32
    scf.if %2 {
      %cst = arith.constant 0.000000e+00 : f32
      %18 = vector.broadcast %cst : f32 to vector<8x32xf32>
      %c0_10 = arith.constant 0 : index
      %c0_11 = arith.constant 0 : index
      %19 = vector.load %arg5[%c0_10, %c0_11] : memref<8x32xf32, #tpu.memory_space<vmem>>, vector<8x32xf32>
      tpu.vector_store %arg5[%c0_10, %c0_11], %18 {strides = array<i32>} : memref<8x32xf32, #tpu.memory_space<vmem>>, vector<8x32xf32>,
    } else {
    }
    %c0 = arith.constant 0 : index
    %c0_1 = arith.constant 0 : index
    %3 = vector.load %arg2[%c0, %c0_1] : memref<32x32xf32, #tpu.memory_space<vmem>>, vector<32x32xf32>
    %c0_2 = arith.constant 0 : index
    %c0_3 = arith.constant 0 : index
    %4 = vector.load %arg3[%c0_2, %c0_3] : memref<32x32xf32, #tpu.memory_space<vmem>>, vector<32x32xf32>
    %5 = arith.subf %3, %4 : vector<32x32xf32>
    %6 = arith.mulf %5, %5 : vector<32x32xf32>
    %c0_4 = arith.constant 0 : index
    %c0_5 = arith.constant 0 : index
    %7 = vector.load %arg4[%c0_4, %c0_5] : memref<32x1xf32, #tpu.memory_space<vmem>>, vector<32x1xf32>
    %8 = vector.broadcast %7 : vector<32x1xf32> to vector<32x32xf32>
    %9 = arith.mulf %6, %8 : vector<32x32xf32>
    %c1_i32 = arith.constant 1 : i32
    %10 = arith.muli %arg0, %c1_i32 : i32
    %11 = arith.addi %10, %arg1 : i32
    %c0_i32_6 = arith.constant 0 : i32
    %12 = arith.cmpi slt, %11, %c0_i32_6 : i32
    %13 = arith.extui %12 : i1 to i32
    %c0_i32_7 = arith.constant 0 : i32
    %14 = arith.cmpi ne, %13, %c0_i32_7 : i32
    scf.if %14 {
      %c0_10 = arith.constant 0 : index
      %c0_11 = arith.constant 0 : index
      %18 = vector.load %arg5[%c0_10, %c0_11] : memref<8x32xf32, #tpu.memory_space<vmem>>, vector<8x32xf32>
      %19 = vector.shape_cast %9 : vector<32x32xf32> to vector<4x8x32xf32>
      %cst = arith.constant dense<0.000000e+00> : vector<8x32xf32>
      %20 = vector.multi_reduction <add>, %19, %cst [0] : vector<4x8x32xf32> to vector<8x32xf32>
      %21 = arith.addf %18, %20 : vector<8x32xf32>
      %c0_12 = arith.constant 0 : index
      %c0_13 = arith.constant 0 : index
      %22 = vector.load %arg5[%c0_12, %c0_13] : memref<8x32xf32, #tpu.memory_space<vmem>>, vector<8x32xf32>
      tpu.vector_store %arg5[%c0_12, %c0_13], %21 {strides = array<i32>} : memref<8x32xf32, #tpu.memory_space<vmem>>, vector<8x32xf32>,
    } else {
    }
    %c0_i32_8 = arith.constant 0 : i32
    %15 = arith.cmpi sge, %11, %c0_i32_8 : i32
    %16 = arith.extui %15 : i1 to i32
    %c0_i32_9 = arith.constant 0 : i32
    %17 = arith.cmpi ne, %16, %c0_i32_9 : i32
    scf.if %17 {
      %c32_i32 = arith.constant 32 : i32
      %18 = arith.muli %11, %c32_i32 : i32
      %19 = tpu.iota {dimensions = array<i32: 0>} : vector<32x1xi32>
      %20 = vector.broadcast %18 : i32 to vector<32x1xi32>
      %21 = arith.addi %20, %19 : vector<32x1xi32>
      %c16_i32 = arith.constant 16 : i32
      %22 = vector.broadcast %c16_i32 : i32 to vector<32x1xi32>
      %23 = arith.cmpi slt, %21, %22 : vector<32x1xi32>
      %cst = arith.constant 0.000000e+00 : f32
      %24 = vector.shape_cast %23 : vector<32x1xi1> to vector<32x1xi1>
      %25 = vector.broadcast %24 : vector<32x1xi1> to vector<32x32xi1>
      %26 = vector.broadcast %cst : f32 to vector<32x32xf32>
      %27 = arith.select %25, %9, %26 : vector<32x32xi1>, vector<32x32xf32>
      %c0_10 = arith.constant 0 : index
      %c0_11 = arith.constant 0 : index
      %28 = vector.load %arg5[%c0_10, %c0_11] : memref<8x32xf32, #tpu.memory_space<vmem>>, vector<8x32xf32>
      %29 = vector.shape_cast %27 : vector<32x32xf32> to vector<4x8x32xf32>
      %cst_12 = arith.constant dense<0.000000e+00> : vector<8x32xf32>
      %30 = vector.multi_reduction <add>, %29, %cst_12 [0] : vector<4x8x32xf32> to vector<8x32xf32>
      %31 = arith.addf %28, %30 : vector<8x32xf32>
      %c0_13 = arith.constant 0 : index
      %c0_14 = arith.constant 0 : index
      %32 = vector.load %arg5[%c0_13, %c0_14] : memref<8x32xf32, #tpu.memory_space<vmem>>, vector<8x32xf32>
      tpu.vector_store %arg5[%c0_13, %c0_14], %31 {strides = array<i32>} : memref<8x32xf32, #tpu.memory_space<vmem>>, vector<8x32xf32>,
    } else {
    }
    return
  }
  func.func @transform_0(%arg0: i32, %arg1: i32) -> (i32, i32) {
    %c1_i32 = arith.constant 1 : i32
    %0 = arith.muli %arg0, %c1_i32 : i32
    %1 = arith.addi %0, %arg1 : i32
    %c0_i32 = arith.constant 0 : i32
    %2 = arith.minsi %1, %c0_i32 : i32
    %c0_i32_0 = arith.constant 0 : i32
    %c0_i32_1 = arith.constant 0 : i32
    return %2, %c0_i32_0 : i32, i32
  }
  func.func @transform_1(%arg0: i32, %arg1: i32) -> (i32, i32) {
    %c1_i32 = arith.constant 1 : i32
    %0 = arith.muli %arg0, %c1_i32 : i32
    %1 = arith.addi %0, %arg1 : i32
    %c0_i32 = arith.constant 0 : i32
    %2 = arith.minsi %1, %c0_i32 : i32
    %c0_i32_0 = arith.constant 0 : i32
    %c0_i32_1 = arith.constant 0 : i32
    return %2, %c0_i32_0 : i32, i32
  }
  func.func @transform_2(%arg0: i32, %arg1: i32) -> (i32, i32) {
    %c1_i32 = arith.constant 1 : i32
    %0 = arith.muli %arg0, %c1_i32 : i32
    %1 = arith.addi %0, %arg1 : i32
    %c0_i32 = arith.constant 0 : i32
    %2 = arith.minsi %1, %c0_i32 : i32
    %c0_i32_0 = arith.constant 0 : i32
    %c0_i32_1 = arith.constant 0 : i32
    return %2, %c0_i32_0 : i32, i32
  }
  func.func @transform_3(%arg0: i32, %arg1: i32) -> (i32, i32) {
    %c0_i32 = arith.constant 0 : i32
    %c0_i32_0 = arith.constant 0 : i32
    return %arg0, %c0_i32 : i32, i32
  }
}

</mosaic_0001>

<llo_original>
// kernel: _mae_partial_sums.1
$region0: #{_mae_partial_sums.1}
  #allocation0 [shape = 'u32[]', space=smem, size = 0x4, offset = 0x4, fixed_abs, tag = 'smem constant byte address 0x4 - core index']
  #allocation1 [shape = 'u32[144,128]{1,0:T(1,128)}', space=vmem, size = 0x12000, scoped, tag = 'internal scratch']
  %s0 = inlined_call_operand.vmem [shape: f32[16,32], index: 0, kind: input, shape index: {}]
  %s1 = inlined_call_operand.hbm [shape: f32[16,32], index: 1, kind: input, shape index: {}]
  %s2 = inlined_call_operand.vmem [shape: f32[16,1], index: 2, kind: input, shape index: {}]
  %s3 = inlined_call_operand.hbm [shape: f32[8,32], index: 3, kind: output, shape index: {}]
  %s4 = sld [smem:[#allocation0]]
  $region38: #{_mae_partial_sums.1} parent=0
    _
  %s6 = ssub.s32 1, %s4
  %s7 = scalar_select 0, %s6, %s4
  $region1: #{_mae_partial_sums.1} parent=0
    #allocation2 [shape = 'u8[16384]{0}', space=vmem, size = 0x4000, scoped, tag = 'input window, operand 1, single buffered']
    #allocation3 [shape = 's32[1]{0}', space=sflag, size = 0x4, scoped, tag = 'scoped memory for _mae_partial_sums.1']
    #allocation4 [shape = 's32[1]{0}', space=sflag, size = 0x4, scoped, tag = 'scoped memory for _mae_partial_sums.1']
    #allocation5 [shape = 'u8[4096]{0}', space=vmem, size = 0x1000, scoped, tag = 'output window, operand 0, single buffered']
    %8 = vsyncpa [#allocation3], 0
    %9 = vsyncpa [#allocation4], 0
    // Predicated region
    $region2: #{_mae_partial_sums.1} parent=1 // pred_check
      _
    $region3: #{_mae_partial_sums.1} parent=1 // pred_check_branch
      %11 = sbr.rel (0) target = $region5
    $region4: #{_mae_partial_sums.1} parent=1 // pred_region
      %s12 = sadd.s32 0, 0
      %p13 = scmp.lt.s32.totalorder %s12, 0
      %s14 = scalar_select %p13, %s12, 0
      %s15 = smul.u32 4, %s14
      %s16 = ssub.s32 2, %s15
      %s17 = smul.u32 128, %s16
      %p18 = scmp.lt.s32.totalorder %s15, 1
      %s19 = scalar_select %p18, %s15, 1
      %s20 = smul.addr %s19, 8
      %s21 = scalar_lea.vmem %s0, %s20
      %s22 = sadd.s32 0, 0
      %p23 = scmp.lt.s32.totalorder %s22, 0
      %s24 = scalar_select %p23, %s22, 0
      %s25 = smul.u32 4, %s24
      %s26 = ssub.s32 2, %s25
      %s27 = smul.u32 128, %s26
    $region5: #{_mae_partial_sums.1} parent=1 // pred_fallthru
      _
    // Predicated region
    $region6: #{_mae_partial_sums.1} parent=1 // pred_check
      _
    $region7: #{_mae_partial_sums.1} parent=1 // pred_check_branch
      %29 = sbr.rel (0) target = $region9
    $region8: #{_mae_partial_sums.1} parent=1 // pred_region
      %s30 = sadd.s32 0, 0
      %p31 = scmp.lt.s32.totalorder %s30, 0
      %s32 = scalar_select %p31, %s30, 0
      %s33 = smul.u32 4, %s32
      %s34 = ssub.s32 2, %s33
      %s35 = smul.u32 128, %s34
      %s37 = ssub.s32 512, %s35
      %38 = vsyncadd [#allocation3], %s37
      %p39 = scmp.ne.s32.totalorder 0, %s35
      %s40 = smul.addr %s33, 128
      %s41 = scalar_lea.hbm %s1, %s40
      %s42 = smul.u32 8, %s34
      %s43 = sshll.u32 [#allocation2], 4
      %s44 = int_to_ptr.vmem [resolvable:$true] %s43
      %s45 = sshll.u32 %s42, 4
      %49 = dma.hbm_to_vmem [thread:$0]  (%p39), %s41, %s45, %s44, [#allocation3], 128, 128, 8
    $region9: #{_mae_partial_sums.1} parent=1 // pred_fallthru
      _
    // Predicated region
    $region10: #{_mae_partial_sums.1} parent=1 // pred_check
      _
    $region11: #{_mae_partial_sums.1} parent=1 // pred_check_branch
      %51 = sbr.rel (0) target = $region13
    $region12: #{_mae_partial_sums.1} parent=1 // pred_region
      %s52 = sadd.s32 0, 0
      %p53 = scmp.lt.s32.totalorder %s52, 0
      %s54 = scalar_select %p53, %s52, 0
      %s55 = smul.u32 4, %s54
      %s56 = ssub.s32 2, %s55
      %s57 = smul.u32 128, %s56
      %p58 = scmp.lt.s32.totalorder %s55, 1
      %s59 = scalar_select %p58, %s55, 1
      %s60 = smul.addr %s59, 8
      %s61 = scalar_lea.vmem %s2, %s60
      %s62 = sadd.s32 0, 0
      %p63 = scmp.lt.s32.totalorder %s62, 0
      %s64 = scalar_select %p63, %s62, 0
      %s65 = smul.u32 4, %s64
      %s66 = ssub.s32 2, %s65
      %s67 = smul.u32 128, %s66
    $region13: #{_mae_partial_sums.1} parent=1 // pred_fallthru
      _
    // Predicated region
    $region14: #{_mae_partial_sums.1} parent=1 // pred_check
      _
    $region15: #{_mae_partial_sums.1} parent=1 // pred_check_branch
      %69 = sbr.rel (0) target = $region17
    $region16: #{_mae_partial_sums.1} parent=1 // pred_region
      %70 = dma.done [#allocation3], 512
    $region17: #{_mae_partial_sums.1} parent=1 // pred_fallthru
      _
    %s71 = sadd.s32 0, 0
    %p72 = scmp.lt.s32.totalorder %s71, 0
    %s73 = scalar_select %p72, %s71, 0
    %s74 = smul.u32 4, %s73
    %s75 = ssub.s32 2, %s74
    %s76 = smul.u32 128, %s75
    %p77 = scmp.lt.s32.totalorder %s74, 1
    %s78 = scalar_select %p77, %s74, 1
    %s79 = smul.addr %s78, 8
    %s80 = scalar_lea.vmem %s0, %s79
    %s81 = sadd.s32 0, 0
    %p82 = scmp.lt.s32.totalorder %s81, 0
    %s83 = scalar_select %p82, %s81, 0
    %s84 = smul.u32 4, %s83
    %s85 = ssub.s32 2, %s84
    %s86 = smul.u32 128, %s85
    %p87 = scmp.lt.s32.totalorder %s84, 1
    %s88 = scalar_select %p87, %s84, 1
    %s89 = smul.addr %s88, 8
    %s90 = scalar_lea.vmem %s2, %s89
    %s91 = sadd.s32 0, 0
    %p92 = scmp.lt.s32.totalorder %s91, 0
    %s93 = scalar_select %p92, %s91, 0
    %s94 = smul.u32 4, %s93
    %s95 = ssub.s32 2, %s94
    %s96 = smul.u32 128, %s95
    %p97 = scmp.lt.s32.totalorder %s94, 1
    %s98 = scalar_select %p97, %s94, 1
    %s99 = smul.addr %s98, 8
    %s100 = scalar_lea.vmem %s0, %s99
    %s101 = sadd.s32 0, 0
    %p102 = scmp.lt.s32.totalorder %s101, 0
    %s103 = scalar_select %p102, %s101, 0
    %s104 = smul.u32 4, %s103
    %s105 = ssub.s32 2, %s104
    %s106 = smul.u32 128, %s105
    %s107 = sadd.s32 0, 0
    %p108 = scmp.lt.s32.totalorder %s107, 0
    %s109 = scalar_select %p108, %s107, 0
    %s110 = smul.u32 4, %s109
    %s111 = ssub.s32 2, %s110
    %s112 = smul.u32 128, %s111
    %s113 = sadd.s32 0, 0
    %p114 = scmp.lt.s32.totalorder %s113, 0
    %s115 = scalar_select %p114, %s113, 0
    %s116 = smul.u32 4, %s115
    %s117 = ssub.s32 2, %s116
    %s118 = smul.u32 128, %s117
    %p119 = scmp.lt.s32.totalorder %s116, 1
    %s120 = scalar_select %p119, %s116, 1
    %s121 = smul.addr %s120, 8
    %s122 = scalar_lea.vmem %s2, %s121
    %s123 = sadd.s32 0, 0
    %p124 = scmp.lt.s32.totalorder %s123, 0
    %s125 = scalar_select %p124, %s123, 0
    %s126 = smul.u32 4, %s125
    %s127 = ssub.s32 2, %s126
    %s128 = smul.u32 128, %s127
    %p129 = scmp.eq.s32.totalorder 0, 0
    // Predicated region
    $region18: #{_mae_partial_sums.1} parent=1 // pred_check
      %p130 = pneg %p129
    $region19: #{_mae_partial_sums.1} parent=1 // pred_check_branch
      %132 = sbr.rel (%p130) target = $region21
    $region20: #{_mae_partial_sums.1} parent=1 // pred_region
      %vm133 = vcmask 261120
      %134 = vst.msk [vmem:[#allocation5] sm:$0xff] %vm133, 0.0
    $region21: #{_mae_partial_sums.1} parent=1 // pred_fallthru
      _
    %v135 = vld [vmem:[%s100] sm:$0xff]
    %v136 = vld [vmem:[%s100 + $0x8] sm:$0xff]
    %v137 = vld [vmem:[%s100 + $0x10] sm:$0xff]
    %v138 = vld [vmem:[%s100 + $0x18] sm:$0xff]
    %v139 = vld [vmem:[#allocation2] sm:$0xff]
    %v140 = vld [vmem:[#allocation2 + $0x8] sm:$0xff]
    %v141 = vld [vmem:[#allocation2 + $0x10] sm:$0xff]
    %v142 = vld [vmem:[#allocation2 + $0x18] sm:$0xff]
    %v143 = vsub.f32 %v135, %v139
    %v144 = vsub.f32 %v136, %v140
    %v145 = vsub.f32 %v137, %v141
    %v146 = vsub.f32 %v138, %v142
    %v147 = vmul.f32 %v143, %v143
    %v148 = vmul.f32 %v144, %v144
    %v149 = vmul.f32 %v145, %v145
    %v150 = vmul.f32 %v146, %v146
    %v151 = vld [vmem:[%s122] sm:$0xff]
    %v152 = vld [vmem:[%s122 + $0x8] sm:$0xff]
    %v153 = vld [vmem:[%s122 + $0x10] sm:$0xff]
    %v154 = vld [vmem:[%s122 + $0x18] sm:$0xff]
    %156 = vset.pattern.permute.xlu0 0
    %157 = vperm.xlu0 %156, %v151
    %v158 = vpop.permute.xlu0 %157
    %161 = vset.pattern.permute.xlu0 0
    %162 = vperm.xlu0 %161, %v152
    %v163 = vpop.permute.xlu0 %162
    %166 = vset.pattern.permute.xlu0 0
    %167 = vperm.xlu0 %166, %v153
    %v168 = vpop.permute.xlu0 %167
    %171 = vset.pattern.permute.xlu0 0
    %172 = vperm.xlu0 %171, %v154
    %v173 = vpop.permute.xlu0 %172
    %v175 = vmul.f32 %v147, %v158
    %v176 = vmul.f32 %v148, %v163
    %v177 = vmul.f32 %v149, %v168
    %v178 = vmul.f32 %v150, %v173
    %s179 = sadd.s32 0, 0
    %p180 = scmp.lt.s32.totalorder %s179, 0
    // Predicated region
    $region22: #{_mae_partial_sums.1} parent=1 // pred_check
      %p181 = pneg %p180
    $region23: #{_mae_partial_sums.1} parent=1 // pred_check_branch
      %183 = sbr.rel (%p181) target = $region25
    $region24: #{_mae_partial_sums.1} parent=1 // pred_region
      %v184 = vld [vmem:[#allocation5] sm:$0xff]
      %vm185 = vcmask 261120
      %v186 = vsel %vm185, %v175, 0.0
      %v187 = vsel %vm185, %v176, 0.0
      %v188 = vadd.f32 %v186, %v187
      %v189 = vsel %vm185, %v177, 0.0
      %v190 = vadd.f32 %v188, %v189
      %v191 = vsel %vm185, %v178, 0.0
      %v192 = vadd.f32 %v190, %v191
      %v193 = vadd.f32 %v184, %v192
      %194 = vst.msk [vmem:[#allocation5] sm:$0xff] %vm185, %v193
    $region25: #{_mae_partial_sums.1} parent=1 // pred_fallthru
      _
    %p195 = scmp.ge.s32.totalorder %s179, 0
    // Predicated region
    $region26: #{_mae_partial_sums.1} parent=1 // pred_check
      %p196 = pneg %p195
    $region27: #{_mae_partial_sums.1} parent=1 // pred_check_branch
      %198 = sbr.rel (%p196) target = $region29
    $region28: #{_mae_partial_sums.1} parent=1 // pred_region
      %s199 = smul.u32 %s179, 32
      %v200 = vlaneseq
      %v201 = vshrl.u32 %v200, 7
      %v202 = vadd.s32 %v201, 8
      %v203 = vadd.s32 %v201, 16
      %v204 = vadd.s32 %v201, 24
      %v205 = vstv %s199
      %v206 = vadd.s32 %v205, %v201
      %v207 = vadd.s32 %v205, %v202
      %v208 = vadd.s32 %v205, %v203
      %v209 = vadd.s32 %v205, %v204
      %vm210 = vcmp.lt.s32.totalorder %v206, 16
      %vm211 = vcmp.lt.s32.totalorder %v207, 16
      %vm212 = vcmp.lt.s32.totalorder %v208, 16
      %vm213 = vcmp.lt.s32.totalorder %v209, 16
      %v214 = vsel %vm210, 1, 0
      %v215 = vsel %vm211, 1, 0
      %v216 = vsel %vm212, 1, 0
      %v217 = vsel %vm213, 1, 0
      %vm218 = vcmp.eq.s32.totalorder %v214, 1
      %vm219 = vcmp.eq.s32.totalorder %v215, 1
      %vm220 = vcmp.eq.s32.totalorder %v216, 1
      %vm221 = vcmp.eq.s32.totalorder %v217, 1
      %v222 = vsel %vm218, %v175, 0.0
      %v223 = vsel %vm219, %v176, 0.0
      %v224 = vsel %vm220, %v177, 0.0
      %v225 = vsel %vm221, %v178, 0.0
      %v226 = vld [vmem:[#allocation5] sm:$0xff]
      %vm227 = vcmask 261120
      %v228 = vsel %vm227, %v222, 0.0
      %v229 = vsel %vm227, %v223, 0.0
      %v230 = vadd.f32 %v228, %v229
      %v231 = vsel %vm227, %v224, 0.0
      %v232 = vadd.f32 %v230, %v231
      %v233 = vsel %vm227, %v225, 0.0
      %v234 = vadd.f32 %v232, %v233
      %v235 = vadd.f32 %v226, %v234
      %236 = vst.msk [vmem:[#allocation5] sm:$0xff] %vm227, %v235
    $region29: #{_mae_partial_sums.1} parent=1 // pred_fallthru
      _
    // Predicated region
    $region30: #{_mae_partial_sums.1} parent=1 // pred_check
      _
    $region31: #{_mae_partial_sums.1} parent=1 // pred_check_branch
      %238 = sbr.rel (0) target = $region33
    $region32: #{_mae_partial_sums.1} parent=1 // pred_region
      %s240 = ssub.s32 128, 128
      %241 = vsyncadd [#allocation4], %s240
      %s243 = sshll.u32 [#allocation5], 4
      %s244 = int_to_ptr.vmem [resolvable:$true] %s243
      %246 = dma.vmem_to_hbm [thread:$0]  %s244, 128, %s3, [#allocation4]
    $region33: #{_mae_partial_sums.1} parent=1 // pred_fallthru
      _
    // Predicated region
    $region34: #{_mae_partial_sums.1} parent=1 // pred_check
      _
    $region35: #{_mae_partial_sums.1} parent=1 // pred_check_branch
      %248 = sbr.rel (0) target = $region37
    $region36: #{_mae_partial_sums.1} parent=1 // pred_region
      %249 = dma.done [#allocation4], 128
    $region37: #{_mae_partial_sums.1} parent=1 // pred_fallthru
      _
    %250 = vsyncpa [#allocation3], 1
    %251 = vsyncpa [#allocation4], 1

</llo_original>
